<compile_context>
chip_gen: v5e
topology: v5e:2x2
jax: 0.10.0
libtpu: 0.0.40
codegen_flags: <defaults>
</compile_context>

<pallas_src>
import functools

import numpy as np
import jax
import jax.numpy as jnp
from jax import lax
from jax.experimental import pallas as pl
from jax.experimental.pallas import tpu as pltpu

KSIZE = 3
PAD = 1


def _dsc_kernel(x_ref, mask_ref, dw_w_ref, dw_b_ref, pw_w_ref,
                scale_ref, shift_ref, o_ref, *, W):
    # x_ref     : (Cin, H*W)   one batch element, spatial flattened onto lanes
    # mask_ref  : (9, H*W)     0/1 boundary masks, one per 3x3 tap (in-kernel halo)
    # dw_w_ref  : (Cin, 9)     depthwise weights (row-major 3x3 taps)
    # dw_b_ref  : (Cin, 1)     depthwise bias
    # pw_w_ref  : (Cout, Cin)  pointwise weights
    # scale_ref : (Cout, 1)    folded BN scale
    # shift_ref : (Cout, 1)    folded BN shift (includes pointwise bias)
    # o_ref     : (Cout, H*W)
    Cin, HW = x_ref.shape
    Cout = o_ref.shape[0]

    x = x_ref[...]                     # (Cin, HW) f32
    dw_w = dw_w_ref[...]               # (Cin, 9)
    mask = mask_ref[...]               # (9, HW)

    # Depthwise 3x3: 9 lane-rolled (XLU) + masked VPU MACs over all Cin channels.
    acc = jnp.broadcast_to(dw_b_ref[...], (Cin, HW))
    k = 0
    for kh in (-1, 0, 1):
        for kw in (-1, 0, 1):
            s = kh * W + kw            # flat-index offset of this tap
            if s == 0:
                tap = x
            else:
                shifted = pltpu.roll(x, shift=(-s) % HW, axis=1)  # out[p] = x[p + s]
                tap = shifted * mask[k:k + 1, :]
            acc = acc + tap * dw_w[:, k:k + 1]
            k += 1

    # Pointwise 1x1 conv as Cin broadcast MACs on the VPU (too small for the MXU).
    pw_w = pw_w_ref[...]               # (Cout, Cin)
    y = pw_w[:, 0:1] * acc[0:1, :]
    for ci in range(1, Cin):
        y = y + pw_w[:, ci:ci + 1] * acc[ci:ci + 1, :]

    # Fused BatchNorm (eval) + ReLU, single lane-dense store.
    y = y * scale_ref[...] + shift_ref[...]
    o_ref[...] = jnp.maximum(y, 0.0).astype(o_ref.dtype)


@jax.jit
def depthwise_separable_conv(x_nchw, dw_w_oihw, dw_b, pw_w_oihw, pw_b,
                             gamma, beta, run_mean, run_var, eps=1e-5):
    N, Cin, H, W = x_nchw.shape
    Cout = pw_w_oihw.shape[0]
    HW = H * W

    # NCHW kept as-is; flattening (H, W) onto the last (lane) axis is a free reshape.
    x = x_nchw.reshape(N, Cin, HW).astype(jnp.float32)

    # Parameter re-layout (tiny, channel-major).
    dw_w = dw_w_oihw.reshape(Cin, KSIZE * KSIZE).astype(jnp.float32)   # (Cin, 9)
    dw_b2 = dw_b.reshape(Cin, 1).astype(jnp.float32)                   # (Cin, 1)
    pw_w = pw_w_oihw.reshape(Cout, Cin).astype(jnp.float32)            # (Cout, Cin)

    # Fold pointwise bias + BatchNorm (eval mode) into per-channel scale/shift.
    scale = gamma / jnp.sqrt(run_var + eps)                            # (Cout,)
    shift = (pw_b - run_mean) * scale + beta                           # (Cout,)
    scale2 = scale.reshape(Cout, 1).astype(jnp.float32)
    shift2 = shift.reshape(Cout, 1).astype(jnp.float32)

    # Precompute the 9 boundary masks as host constants (replaces wrapper-side jnp.pad).
    rows = np.arange(H).repeat(W)                                      # (HW,)
    cols = np.tile(np.arange(W), H)                                    # (HW,)
    masks = []
    for kh in (-1, 0, 1):
        for kw in (-1, 0, 1):
            m = ((rows + kh >= 0) & (rows + kh < H) &
                 (cols + kw >= 0) & (cols + kw < W))
            masks.append(m.astype(np.float32))
    mask_arr = jnp.asarray(np.stack(masks))                            # (9, HW)

    kernel = functools.partial(_dsc_kernel, W=W)

    out = pl.pallas_call(
        kernel,
        out_shape=jax.ShapeDtypeStruct((N, Cout, HW), jnp.float32),
        grid=(N,),
        in_specs=[
            pl.BlockSpec((None, Cin, HW), lambda n: (n, 0, 0)),
            pl.BlockSpec((KSIZE * KSIZE, HW), lambda n: (0, 0)),
            pl.BlockSpec((Cin, KSIZE * KSIZE), lambda n: (0, 0)),
            pl.BlockSpec((Cin, 1), lambda n: (0, 0)),
            pl.BlockSpec((Cout, Cin), lambda n: (0, 0)),
            pl.BlockSpec((Cout, 1), lambda n: (0, 0)),
            pl.BlockSpec((Cout, 1), lambda n: (0, 0)),
        ],
        out_specs=pl.BlockSpec((None, Cout, HW), lambda n: (n, 0, 0)),
        compiler_params=pltpu.CompilerParams(
            dimension_semantics=("parallel",)),
    )(x, mask_arr, dw_w, dw_b2, pw_w, scale2, shift2)

    # Free reshape back to NCHW (output is already channel-major; no transpose needed).
    return out.reshape(N, Cout, H, W)


def _reference(x_nchw, dw_w_oihw, dw_b, pw_w_oihw, pw_b,
               gamma, beta, run_mean, run_var, eps=1e-5):
    Cin = x_nchw.shape[1]
    dn = ("NCHW", "OIHW", "NCHW")
    dw = lax.conv_general_dilated(x_nchw, dw_w_oihw, (1, 1),
                                  ((PAD, PAD), (PAD, PAD)),
                                  dimension_numbers=dn,
                                  feature_group_count=Cin)
    dw = dw + dw_b[None, :, None, None]
    pw = lax.conv_general_dilated(dw, pw_w_oihw, (1, 1), "VALID",
                                  dimension_numbers=dn)
    pw = pw + pw_b[None, :, None, None]
    bn = (pw - run_mean[None, :, None, None]) / jnp.sqrt(
        run_var[None, :, None, None] + eps)
    bn = bn * gamma[None, :, None, None] + beta[None, :, None, None]
    return jnp.maximum(bn, 0.0)


if __name__ == "__main__":
    N, Cin, Cout, H, W = 2, 4, 8, 16, 16

    key = jax.random.PRNGKey(0)
    keys = jax.random.split(key, 8)
    x = jax.random.normal(keys[0], (N, Cin, H, W), jnp.float32)

    # Deterministic parameter init (shapes match the PyTorch module).
    dw_w = jax.random.normal(keys[1], (Cin, 1, KSIZE, KSIZE), jnp.float32) * 0.2
    dw_b = jax.random.normal(keys[2], (Cin,), jnp.float32) * 0.1
    pw_w = jax.random.normal(keys[3], (Cout, Cin, 1, 1), jnp.float32) * 0.2
    pw_b = jax.random.normal(keys[4], (Cout,), jnp.float32) * 0.1
    gamma = 1.0 + 0.1 * jax.random.normal(keys[5], (Cout,), jnp.float32)
    beta = 0.1 * jax.random.normal(keys[6], (Cout,), jnp.float32)
    run_mean = 0.1 * jax.random.normal(keys[7], (Cout,), jnp.float32)
    run_var = jnp.abs(jax.random.normal(key, (Cout,), jnp.float32)) + 0.5

    out = depthwise_separable_conv(x, dw_w, dw_b, pw_w, pw_b,
                                   gamma, beta, run_mean, run_var)
    out = jax.block_until_ready(out)

    ref = _reference(x, dw_w, dw_b, pw_w, pw_b, gamma, beta, run_mean, run_var)
    assert out.shape == (N, Cout, H, W), out.shape
    assert jnp.allclose(out, ref, atol=1e-4, rtol=1e-4), float(
        jnp.max(jnp.abs(out - ref)))

    print("KERNEL_OK")
</pallas_src>

<mosaic_0001>
module attributes {stable_mosaic.version = 11 : i64} {
  func.func @_dsc_kernel(%arg0: i32, %arg1: memref<1x4x256xf32, #tpu.memory_space<vmem>>, %arg2: memref<9x256xf32, #tpu.memory_space<vmem>>, %arg3: memref<4x9xf32, #tpu.memory_space<vmem>>, %arg4: memref<4x1xf32, #tpu.memory_space<vmem>>, %arg5: memref<8x4xf32, #tpu.memory_space<vmem>>, %arg6: memref<8x1xf32, #tpu.memory_space<vmem>>, %arg7: memref<8x1xf32, #tpu.memory_space<vmem>>, %arg8: memref<1x8x256xf32, #tpu.memory_space<vmem>>) attributes {dimension_semantics = [#tpu.dimension_semantics<parallel>], iteration_bounds = array<i64: 2>, scalar_prefetch = 0 : i64, scratch_operands = 0 : i64, tpu.core_type = #tpu.core_type<tc>, window_params = [{transform_indices = @transform_0, window_bounds = array<i64: 1, 4, 256>}, {pipeline_mode = #tpu.pipeline_mode<synchronous>, transform_indices = @transform_1, window_bounds = array<i64: 9, 256>}, {pipeline_mode = #tpu.pipeline_mode<synchronous>, transform_indices = @transform_2, window_bounds = array<i64: 4, 9>}, {pipeline_mode = #tpu.pipeline_mode<synchronous>, transform_indices = @transform_3, window_bounds = array<i64: 4, 1>}, {pipeline_mode = #tpu.pipeline_mode<synchronous>, transform_indices = @transform_4, window_bounds = array<i64: 8, 4>}, {pipeline_mode = #tpu.pipeline_mode<synchronous>, transform_indices = @transform_5, window_bounds = array<i64: 8, 1>}, {pipeline_mode = #tpu.pipeline_mode<synchronous>, transform_indices = @transform_6, window_bounds = array<i64: 8, 1>}, {transform_indices = @transform_7, window_bounds = array<i64: 1, 8, 256>}]} {
    %c0 = arith.constant 0 : index
    %c0_0 = arith.constant 0 : index
    %c0_1 = arith.constant 0 : index
    %0 = vector.load %arg1[%c0, %c0_0, %c0_1] : memref<1x4x256xf32, #tpu.memory_space<vmem>>, vector<1x4x256xf32>
    %1 = vector.shape_cast %0 : vector<1x4x256xf32> to vector<4x256xf32>
    %c0_2 = arith.constant 0 : index
    %c0_3 = arith.constant 0 : index
    %2 = vector.load %arg3[%c0_2, %c0_3] : memref<4x9xf32, #tpu.memory_space<vmem>>, vector<4x9xf32>
    %c0_4 = arith.constant 0 : index
    %c0_5 = arith.constant 0 : index
    %3 = vector.load %arg2[%c0_4, %c0_5] : memref<9x256xf32, #tpu.memory_space<vmem>>, vector<9x256xf32>
    %c0_6 = arith.constant 0 : index
    %c0_7 = arith.constant 0 : index
    %4 = vector.load %arg4[%c0_6, %c0_7] : memref<4x1xf32, #tpu.memory_space<vmem>>, vector<4x1xf32>
    %5 = vector.shape_cast %4 : vector<4x1xf32> to vector<4x1xf32>
    %6 = vector.broadcast %5 : vector<4x1xf32> to vector<4x256xf32>
    %c17_i32 = arith.constant 17 : i32
    %7 = tpu.dynamic_rotate %1 by %c17_i32 dim 1 : vector<4x256xf32>, i32 -> vector<4x256xf32>
    %8 = vector.extract_strided_slice %3 {offsets = [0, 0], sizes = [1, 256], strides = [1, 1]} : vector<9x256xf32> to vector<1x256xf32>
    %9 = vector.broadcast %8 : vector<1x256xf32> to vector<4x256xf32>
    %10 = arith.mulf %7, %9 : vector<4x256xf32>
    %11 = vector.extract_strided_slice %2 {offsets = [0, 0], sizes = [4, 1], strides = [1, 1]} : vector<4x9xf32> to vector<4x1xf32>
    %12 = vector.broadcast %11 : vector<4x1xf32> to vector<4x256xf32>
    %13 = arith.mulf %10, %12 : vector<4x256xf32>
    %14 = arith.addf %6, %13 : vector<4x256xf32>
    %c16_i32 = arith.constant 16 : i32
    %15 = tpu.dynamic_rotate %1 by %c16_i32 dim 1 : vector<4x256xf32>, i32 -> vector<4x256xf32>
    %16 = vector.extract_strided_slice %3 {offsets = [1, 0], sizes = [1, 256], strides = [1, 1]} : vector<9x256xf32> to vector<1x256xf32>
    %17 = vector.broadcast %16 : vector<1x256xf32> to vector<4x256xf32>
    %18 = arith.mulf %15, %17 : vector<4x256xf32>
    %19 = vector.extract_strided_slice %2 {offsets = [0, 1], sizes = [4, 1], strides = [1, 1]} : vector<4x9xf32> to vector<4x1xf32>
    %20 = vector.broadcast %19 : vector<4x1xf32> to vector<4x256xf32>
    %21 = arith.mulf %18, %20 : vector<4x256xf32>
    %22 = arith.addf %14, %21 : vector<4x256xf32>
    %c15_i32 = arith.constant 15 : i32
    %23 = tpu.dynamic_rotate %1 by %c15_i32 dim 1 : vector<4x256xf32>, i32 -> vector<4x256xf32>
    %24 = vector.extract_strided_slice %3 {offsets = [2, 0], sizes = [1, 256], strides = [1, 1]} : vector<9x256xf32> to vector<1x256xf32>
    %25 = vector.broadcast %24 : vector<1x256xf32> to vector<4x256xf32>
    %26 = arith.mulf %23, %25 : vector<4x256xf32>
    %27 = vector.extract_strided_slice %2 {offsets = [0, 2], sizes = [4, 1], strides = [1, 1]} : vector<4x9xf32> to vector<4x1xf32>
    %28 = vector.broadcast %27 : vector<4x1xf32> to vector<4x256xf32>
    %29 = arith.mulf %26, %28 : vector<4x256xf32>
    %30 = arith.addf %22, %29 : vector<4x256xf32>
    %c1_i32 = arith.constant 1 : i32
    %31 = tpu.dynamic_rotate %1 by %c1_i32 dim 1 : vector<4x256xf32>, i32 -> vector<4x256xf32>
    %32 = vector.extract_strided_slice %3 {offsets = [3, 0], sizes = [1, 256], strides = [1, 1]} : vector<9x256xf32> to vector<1x256xf32>
    %33 = vector.broadcast %32 : vector<1x256xf32> to vector<4x256xf32>
    %34 = arith.mulf %31, %33 : vector<4x256xf32>
    %35 = vector.extract_strided_slice %2 {offsets = [0, 3], sizes = [4, 1], strides = [1, 1]} : vector<4x9xf32> to vector<4x1xf32>
    %36 = vector.broadcast %35 : vector<4x1xf32> to vector<4x256xf32>
    %37 = arith.mulf %34, %36 : vector<4x256xf32>
    %38 = arith.addf %30, %37 : vector<4x256xf32>
    %39 = vector.extract_strided_slice %2 {offsets = [0, 4], sizes = [4, 1], strides = [1, 1]} : vector<4x9xf32> to vector<4x1xf32>
    %40 = vector.broadcast %39 : vector<4x1xf32> to vector<4x256xf32>
    %41 = arith.mulf %1, %40 : vector<4x256xf32>
    %42 = arith.addf %38, %41 : vector<4x256xf32>
    %c255_i32 = arith.constant 255 : i32
    %43 = tpu.dynamic_rotate %1 by %c255_i32 dim 1 : vector<4x256xf32>, i32 -> vector<4x256xf32>
    %44 = vector.extract_strided_slice %3 {offsets = [5, 0], sizes = [1, 256], strides = [1, 1]} : vector<9x256xf32> to vector<1x256xf32>
    %45 = vector.broadcast %44 : vector<1x256xf32> to vector<4x256xf32>
    %46 = arith.mulf %43, %45 : vector<4x256xf32>
    %47 = vector.extract_strided_slice %2 {offsets = [0, 5], sizes = [4, 1], strides = [1, 1]} : vector<4x9xf32> to vector<4x1xf32>
    %48 = vector.broadcast %47 : vector<4x1xf32> to vector<4x256xf32>
    %49 = arith.mulf %46, %48 : vector<4x256xf32>
    %50 = arith.addf %42, %49 : vector<4x256xf32>
    %c241_i32 = arith.constant 241 : i32
    %51 = tpu.dynamic_rotate %1 by %c241_i32 dim 1 : vector<4x256xf32>, i32 -> vector<4x256xf32>
    %52 = vector.extract_strided_slice %3 {offsets = [6, 0], sizes = [1, 256], strides = [1, 1]} : vector<9x256xf32> to vector<1x256xf32>
    %53 = vector.broadcast %52 : vector<1x256xf32> to vector<4x256xf32>
    %54 = arith.mulf %51, %53 : vector<4x256xf32>
    %55 = vector.extract_strided_slice %2 {offsets = [0, 6], sizes = [4, 1], strides = [1, 1]} : vector<4x9xf32> to vector<4x1xf32>
    %56 = vector.broadcast %55 : vector<4x1xf32> to vector<4x256xf32>
    %57 = arith.mulf %54, %56 : vector<4x256xf32>
    %58 = arith.addf %50, %57 : vector<4x256xf32>
    %c240_i32 = arith.constant 240 : i32
    %59 = tpu.dynamic_rotate %1 by %c240_i32 dim 1 : vector<4x256xf32>, i32 -> vector<4x256xf32>
    %60 = vector.extract_strided_slice %3 {offsets = [7, 0], sizes = [1, 256], strides = [1, 1]} : vector<9x256xf32> to vector<1x256xf32>
    %61 = vector.broadcast %60 : vector<1x256xf32> to vector<4x256xf32>
    %62 = arith.mulf %59, %61 : vector<4x256xf32>
    %63 = vector.extract_strided_slice %2 {offsets = [0, 7], sizes = [4, 1], strides = [1, 1]} : vector<4x9xf32> to vector<4x1xf32>
    %64 = vector.broadcast %63 : vector<4x1xf32> to vector<4x256xf32>
    %65 = arith.mulf %62, %64 : vector<4x256xf32>
    %66 = arith.addf %58, %65 : vector<4x256xf32>
    %c239_i32 = arith.constant 239 : i32
    %67 = tpu.dynamic_rotate %1 by %c239_i32 dim 1 : vector<4x256xf32>, i32 -> vector<4x256xf32>
    %68 = vector.extract_strided_slice %3 {offsets = [8, 0], sizes = [1, 256], strides = [1, 1]} : vector<9x256xf32> to vector<1x256xf32>
    %69 = vector.broadcast %68 : vector<1x256xf32> to vector<4x256xf32>
    %70 = arith.mulf %67, %69 : vector<4x256xf32>
    %71 = vector.extract_strided_slice %2 {offsets = [0, 8], sizes = [4, 1], strides = [1, 1]} : vector<4x9xf32> to vector<4x1xf32>
    %72 = vector.broadcast %71 : vector<4x1xf32> to vector<4x256xf32>
    %73 = arith.mulf %70, %72 : vector<4x256xf32>
    %74 = arith.addf %66, %73 : vector<4x256xf32>
    %c0_8 = arith.constant 0 : index
    %c0_9 = arith.constant 0 : index
    %75 = vector.load %arg5[%c0_8, %c0_9] : memref<8x4xf32, #tpu.memory_space<vmem>>, vector<8x4xf32>
    %76 = vector.extract_strided_slice %75 {offsets = [0, 0], sizes = [8, 1], strides = [1, 1]} : vector<8x4xf32> to vector<8x1xf32>
    %77 = vector.extract_strided_slice %74 {offsets = [0, 0], sizes = [1, 256], strides = [1, 1]} : vector<4x256xf32> to vector<1x256xf32>
    %78 = vector.broadcast %76 : vector<8x1xf32> to vector<8x256xf32>
    %79 = vector.broadcast %77 : vector<1x256xf32> to vector<8x256xf32>
    %80 = arith.mulf %78, %79 : vector<8x256xf32>
    %81 = vector.extract_strided_slice %75 {offsets = [0, 1], sizes = [8, 1], strides = [1, 1]} : vector<8x4xf32> to vector<8x1xf32>
    %82 = vector.extract_strided_slice %74 {offsets = [1, 0], sizes = [1, 256], strides = [1, 1]} : vector<4x256xf32> to vector<1x256xf32>
    %83 = vector.broadcast %81 : vector<8x1xf32> to vector<8x256xf32>
    %84 = vector.broadcast %82 : vector<1x256xf32> to vector<8x256xf32>
    %85 = arith.mulf %83, %84 : vector<8x256xf32>
    %86 = arith.addf %80, %85 : vector<8x256xf32>
    %87 = vector.extract_strided_slice %75 {offsets = [0, 2], sizes = [8, 1], strides = [1, 1]} : vector<8x4xf32> to vector<8x1xf32>
    %88 = vector.extract_strided_slice %74 {offsets = [2, 0], sizes = [1, 256], strides = [1, 1]} : vector<4x256xf32> to vector<1x256xf32>
    %89 = vector.broadcast %87 : vector<8x1xf32> to vector<8x256xf32>
    %90 = vector.broadcast %88 : vector<1x256xf32> to vector<8x256xf32>
    %91 = arith.mulf %89, %90 : vector<8x256xf32>
    %92 = arith.addf %86, %91 : vector<8x256xf32>
    %93 = vector.extract_strided_slice %75 {offsets = [0, 3], sizes = [8, 1], strides = [1, 1]} : vector<8x4xf32> to vector<8x1xf32>
    %94 = vector.extract_strided_slice %74 {offsets = [3, 0], sizes = [1, 256], strides = [1, 1]} : vector<4x256xf32> to vector<1x256xf32>
    %95 = vector.broadcast %93 : vector<8x1xf32> to vector<8x256xf32>
    %96 = vector.broadcast %94 : vector<1x256xf32> to vector<8x256xf32>
    %97 = arith.mulf %95, %96 : vector<8x256xf32>
    %98 = arith.addf %92, %97 : vector<8x256xf32>
    %c0_10 = arith.constant 0 : index
    %c0_11 = arith.constant 0 : index
    %99 = vector.load %arg6[%c0_10, %c0_11] : memref<8x1xf32, #tpu.memory_space<vmem>>, vector<8x1xf32>
    %100 = vector.broadcast %99 : vector<8x1xf32> to vector<8x256xf32>
    %101 = arith.mulf %98, %100 : vector<8x256xf32>
    %c0_12 = arith.constant 0 : index
    %c0_13 = arith.constant 0 : index
    %102 = vector.load %arg7[%c0_12, %c0_13] : memref<8x1xf32, #tpu.memory_space<vmem>>, vector<8x1xf32>
    %103 = vector.broadcast %102 : vector<8x1xf32> to vector<8x256xf32>
    %104 = arith.addf %101, %103 : vector<8x256xf32>
    %cst = arith.constant 0.000000e+00 : f32
    %105 = vector.broadcast %cst : f32 to vector<8x256xf32>
    %106 = arith.maximumf %104, %105 : vector<8x256xf32>
    %c0_14 = arith.constant 0 : index
    %c0_15 = arith.constant 0 : index
    %c0_16 = arith.constant 0 : index
    %107 = vector.load %arg8[%c0_14, %c0_15, %c0_16] : memref<1x8x256xf32, #tpu.memory_space<vmem>>, vector<1x8x256xf32>
    %108 = vector.shape_cast %107 : vector<1x8x256xf32> to vector<8x256xf32>
    %109 = vector.shape_cast %106 : vector<8x256xf32> to vector<1x8x256xf32>
    tpu.vector_store %arg8[%c0_14, %c0_15, %c0_16], %109 {strides = array<i32>} : memref<1x8x256xf32, #tpu.memory_space<vmem>>, vector<1x8x256xf32>,
    return
  }
  func.func @transform_0(%arg0: i32) -> (i32, i32, i32) {
    %c0_i32 = arith.constant 0 : i32
    %c0_i32_0 = arith.constant 0 : i32
    %c0_i32_1 = arith.constant 0 : i32
    return %arg0, %c0_i32, %c0_i32_0 : i32, i32, i32
  }
  func.func @transform_1(%arg0: i32) -> (i32, i32) {
    %c0_i32 = arith.constant 0 : i32
    %c0_i32_0 = arith.constant 0 : i32
    %c0_i32_1 = arith.constant 0 : i32
    return %c0_i32, %c0_i32_0 : i32, i32
  }
  func.func @transform_2(%arg0: i32) -> (i32, i32) {
    %c0_i32 = arith.constant 0 : i32
    %c0_i32_0 = arith.constant 0 : i32
    %c0_i32_1 = arith.constant 0 : i32
    return %c0_i32, %c0_i32_0 : i32, i32
  }
  func.func @transform_3(%arg0: i32) -> (i32, i32) {
    %c0_i32 = arith.constant 0 : i32
    %c0_i32_0 = arith.constant 0 : i32
    %c0_i32_1 = arith.constant 0 : i32
    return %c0_i32, %c0_i32_0 : i32, i32
  }
  func.func @transform_4(%arg0: i32) -> (i32, i32) {
    %c0_i32 = arith.constant 0 : i32
    %c0_i32_0 = arith.constant 0 : i32
    %c0_i32_1 = arith.constant 0 : i32
    return %c0_i32, %c0_i32_0 : i32, i32
  }
  func.func @transform_5(%arg0: i32) -> (i32, i32) {
    %c0_i32 = arith.constant 0 : i32
    %c0_i32_0 = arith.constant 0 : i32
    %c0_i32_1 = arith.constant 0 : i32
    return %c0_i32, %c0_i32_0 : i32, i32
  }
  func.func @transform_6(%arg0: i32) -> (i32, i32) {
    %c0_i32 = arith.constant 0 : i32
    %c0_i32_0 = arith.constant 0 : i32
    %c0_i32_1 = arith.constant 0 : i32
    return %c0_i32, %c0_i32_0 : i32, i32
  }
  func.func @transform_7(%arg0: i32) -> (i32, i32, i32) {
    %c0_i32 = arith.constant 0 : i32
    %c0_i32_0 = arith.constant 0 : i32
    %c0_i32_1 = arith.constant 0 : i32
    return %arg0, %c0_i32, %c0_i32_0 : i32, i32, i32
  }
}

</mosaic_0001>

<llo_original>
// kernel: depthwise_separable_conv.1
$region0: #{depthwise_separable_conv.1}
  #allocation0 [shape = 'u32[]', space=smem, size = 0x4, offset = 0x4, fixed_abs, tag = 'smem constant byte address 0x4 - core index']
  #allocation1 [shape = 'u32[72,128]{1,0:T(1,128)}', space=vmem, size = 0x9000, scoped, tag = 'internal scratch']
  %s0 = inlined_call_operand.vmem [shape: f32[2,4,256], index: 0, kind: input, shape index: {}]
  %s1 = inlined_call_operand.vmem [shape: f32[9,256], index: 1, kind: input, shape index: {}]
  %s2 = inlined_call_operand.vmem [shape: f32[4,9], index: 2, kind: input, shape index: {}]
  %s3 = inlined_call_operand.vmem [shape: f32[4,1], index: 3, kind: input, shape index: {}]
  %s4 = inlined_call_operand.vmem [shape: f32[8,4], index: 4, kind: input, shape index: {}]
  %s5 = inlined_call_operand.vmem [shape: f32[8,1], index: 5, kind: input, shape index: {}]
  %s6 = inlined_call_operand.vmem [shape: f32[8,1], index: 6, kind: input, shape index: {}]
  %s7 = inlined_call_operand.vmem [shape: f32[2,8,256], index: 7, kind: output, shape index: {}]
  %s8 = sld [smem:[#allocation0]]
  $region61: #{depthwise_separable_conv.1} parent=0
    _
  %s10 = ssub.s32 1, %s8
  %s11 = scalar_select 0, %s10, %s8
  loop: start=0, step=1, limit=4
  $region2: #{depthwise_separable_conv.1} parent=0 // loop_pre_header
    _
  $region3: #{depthwise_separable_conv.1} parent=0 // loop_header
    %s13 = sphi 0, %s17
    %p14 = scmp.ge.s32.totalorder %s13, 4
    %s23 = sphi 0, %s25
    %s26 = sphi 0, %s23
    %s27 = sphi 0, %s26
    %s43 = sphi 0, %s27
    %s47 = sphi 0, %s47
    %s49 = sphi 0, %s47
    %s50 = sphi 0, %s49
    %s64 = sphi 0, %s50
    %s68 = sphi 0, %s68
    %s70 = sphi 0, %s68
    %s71 = sphi 0, %s70
    %s85 = sphi 0, %s71
    %s89 = sphi 0, %s89
    %s91 = sphi 0, %s89
    %s92 = sphi 0, %s91
    %s106 = sphi 0, %s92
    %s110 = sphi 0, %s110
    %s112 = sphi 0, %s110
    %s113 = sphi 0, %s112
    %s127 = sphi 0, %s113
    %s131 = sphi 0, %s131
    %s133 = sphi 0, %s131
    %s134 = sphi 0, %s133
    %s148 = sphi 0, %s134
    %s152 = sphi 0, %s152
    %s154 = sphi 0, %s152
    %s155 = sphi 0, %s154
    %s169 = sphi 0, %s155
    %s175 = sphi 0, %s177
    %s178 = sphi 0, %s175
    %s179 = sphi 0, %s178
    %s195 = sphi 0, %s179
  $region4: #{depthwise_separable_conv.1} parent=0 // loop_header_branch
    %16 = sbr.rel (%p14) target = $region8
  $region5: #{depthwise_separable_conv.1} parent=0 // loop_body
    %s18 = ssub.s32 %s13, 1
    %s19 = ssub.s32 %s13, 2
    %s20 = sadd.s32 %s13, 1
    %s21 = ssub.s32 %s13, %s20
    %p22 = scmp.eq.s32.totalorder %s21, 0
    %s24 = sadd.s32 %s23, 1
    %s25 = scalar_select %p22, %s23, %s24
    %p28 = pneg %p22
    %p29 = scmp.eq.s32.totalorder %s13, 1
    %p30 = por %p28, %p29
    %p31 = scmp.ne.s32.totalorder %s23, %s26
    %p32 = scmp.eq.s32.totalorder %s13, 0
    %p33 = por %p31, %p32
    %p34 = scmp.ne.s32.totalorder %s23, %s26
    %p35 = scmp.eq.s32.totalorder %s18, 1
    %p36 = por %p34, %p35
    %p37 = scmp.ne.s32.totalorder %s26, %s27
    %p38 = scmp.eq.s32.totalorder %s18, 0
    %p39 = por %p37, %p38
    %p40 = scmp.ne.s32.totalorder %s26, %s27
    %p41 = scmp.eq.s32.totalorder %s19, 1
    %p42 = por %p40, %p41
    %p44 = scmp.ne.s32.totalorder %s27, %s43
    %p45 = scmp.eq.s32.totalorder %s19, 0
    %p46 = por %p44, %p45
    %s48 = sadd.s32 %s47, 1
    %p51 = scmp.eq.s32.totalorder %s13, 1
    %p52 = scmp.ne.s32.totalorder %s47, %s49
    %p53 = scmp.eq.s32.totalorder %s13, 0
    %p54 = por %p52, %p53
    %p55 = scmp.ne.s32.totalorder %s47, %s49
    %p56 = scmp.eq.s32.totalorder %s18, 1
    %p57 = por %p55, %p56
    %p58 = scmp.ne.s32.totalorder %s49, %s50
    %p59 = scmp.eq.s32.totalorder %s18, 0
    %p60 = por %p58, %p59
    %p61 = scmp.ne.s32.totalorder %s49, %s50
    %p62 = scmp.eq.s32.totalorder %s19, 1
    %p63 = por %p61, %p62
    %p65 = scmp.ne.s32.totalorder %s50, %s64
    %p66 = scmp.eq.s32.totalorder %s19, 0
    %p67 = por %p65, %p66
    %s69 = sadd.s32 %s68, 1
    %p72 = scmp.eq.s32.totalorder %s13, 1
    %p73 = scmp.ne.s32.totalorder %s68, %s70
    %p74 = scmp.eq.s32.totalorder %s13, 0
    %p75 = por %p73, %p74
    %p76 = scmp.ne.s32.totalorder %s68, %s70
    %p77 = scmp.eq.s32.totalorder %s18, 1
    %p78 = por %p76, %p77
    %p79 = scmp.ne.s32.totalorder %s70, %s71
    %p80 = scmp.eq.s32.totalorder %s18, 0
    %p81 = por %p79, %p80
    %p82 = scmp.ne.s32.totalorder %s70, %s71
    %p83 = scmp.eq.s32.totalorder %s19, 1
    %p84 = por %p82, %p83
    %p86 = scmp.ne.s32.totalorder %s71, %s85
    %p87 = scmp.eq.s32.totalorder %s19, 0
    %p88 = por %p86, %p87
    %s90 = sadd.s32 %s89, 1
    %p93 = scmp.eq.s32.totalorder %s13, 1
    %p94 = scmp.ne.s32.totalorder %s89, %s91
    %p95 = scmp.eq.s32.totalorder %s13, 0
    %p96 = por %p94, %p95
    %p97 = scmp.ne.s32.totalorder %s89, %s91
    %p98 = scmp.eq.s32.totalorder %s18, 1
    %p99 = por %p97, %p98
    %p100 = scmp.ne.s32.totalorder %s91, %s92
    %p101 = scmp.eq.s32.totalorder %s18, 0
    %p102 = por %p100, %p101
    %p103 = scmp.ne.s32.totalorder %s91, %s92
    %p104 = scmp.eq.s32.totalorder %s19, 1
    %p105 = por %p103, %p104
    %p107 = scmp.ne.s32.totalorder %s92, %s106
    %p108 = scmp.eq.s32.totalorder %s19, 0
    %p109 = por %p107, %p108
    %s111 = sadd.s32 %s110, 1
    %p114 = scmp.eq.s32.totalorder %s13, 1
    %p115 = scmp.ne.s32.totalorder %s110, %s112
    %p116 = scmp.eq.s32.totalorder %s13, 0
    %p117 = por %p115, %p116
    %p118 = scmp.ne.s32.totalorder %s110, %s112
    %p119 = scmp.eq.s32.totalorder %s18, 1
    %p120 = por %p118, %p119
    %p121 = scmp.ne.s32.totalorder %s112, %s113
    %p122 = scmp.eq.s32.totalorder %s18, 0
    %p123 = por %p121, %p122
    %p124 = scmp.ne.s32.totalorder %s112, %s113
    %p125 = scmp.eq.s32.totalorder %s19, 1
    %p126 = por %p124, %p125
    %p128 = scmp.ne.s32.totalorder %s113, %s127
    %p129 = scmp.eq.s32.totalorder %s19, 0
    %p130 = por %p128, %p129
    %s132 = sadd.s32 %s131, 1
    %p135 = scmp.eq.s32.totalorder %s13, 1
    %p136 = scmp.ne.s32.totalorder %s131, %s133
    %p137 = scmp.eq.s32.totalorder %s13, 0
    %p138 = por %p136, %p137
    %p139 = scmp.ne.s32.totalorder %s131, %s133
    %p140 = scmp.eq.s32.totalorder %s18, 1
    %p141 = por %p139, %p140
    %p142 = scmp.ne.s32.totalorder %s133, %s134
    %p143 = scmp.eq.s32.totalorder %s18, 0
    %p144 = por %p142, %p143
    %p145 = scmp.ne.s32.totalorder %s133, %s134
    %p146 = scmp.eq.s32.totalorder %s19, 1
    %p147 = por %p145, %p146
    %p149 = scmp.ne.s32.totalorder %s134, %s148
    %p150 = scmp.eq.s32.totalorder %s19, 0
    %p151 = por %p149, %p150
    %s153 = sadd.s32 %s152, 1
    %p156 = scmp.eq.s32.totalorder %s13, 1
    %p157 = scmp.ne.s32.totalorder %s152, %s154
    %p158 = scmp.eq.s32.totalorder %s13, 0
    %p159 = por %p157, %p158
    %p160 = scmp.ne.s32.totalorder %s152, %s154
    %p161 = scmp.eq.s32.totalorder %s18, 1
    %p162 = por %p160, %p161
    %p163 = scmp.ne.s32.totalorder %s154, %s155
    %p164 = scmp.eq.s32.totalorder %s18, 0
    %p165 = por %p163, %p164
    %p166 = scmp.ne.s32.totalorder %s154, %s155
    %p167 = scmp.eq.s32.totalorder %s19, 1
    %p168 = por %p166, %p167
    %p170 = scmp.ne.s32.totalorder %s155, %s169
    %p171 = scmp.eq.s32.totalorder %s19, 0
    %p172 = por %p170, %p171
    %s173 = ssub.s32 %s13, %s20
    %p174 = scmp.eq.s32.totalorder %s173, 0
    %s176 = sadd.s32 %s175, 1
    %s177 = scalar_select %p174, %s175, %s176
    %p180 = pneg %p174
    %p181 = scmp.eq.s32.totalorder %s13, 1
    %p182 = por %p180, %p181
    %p183 = scmp.ne.s32.totalorder %s175, %s178
    %p184 = scmp.eq.s32.totalorder %s13, 0
    %p185 = por %p183, %p184
    %p186 = scmp.ne.s32.totalorder %s175, %s178
    %p187 = scmp.eq.s32.totalorder %s18, 1
    %p188 = por %p186, %p187
    %p189 = scmp.ne.s32.totalorder %s178, %s179
    %p190 = scmp.eq.s32.totalorder %s18, 0
    %p191 = por %p189, %p190
    %p192 = scmp.ne.s32.totalorder %s178, %s179
    %p193 = scmp.eq.s32.totalorder %s19, 1
    %p194 = por %p192, %p193
    %p196 = scmp.ne.s32.totalorder %s179, %s195
    %p197 = scmp.eq.s32.totalorder %s19, 0
    %p198 = por %p196, %p197
    %p199 = scmp.le.s32.totalorder 1, %s13
    %p200 = scmp.lt.s32.totalorder %s13, 3
    %p201 = pnand %p199, %p200
    %p202 = pneg %p201
    // Predicated region
    $region9: #{depthwise_separable_conv.1} parent=5 // pred_check
      _
    $region10: #{depthwise_separable_conv.1} parent=5 // pred_check_branch
      %204 = sbr.rel (%p201) target = $region12
    $region11: #{depthwise_separable_conv.1} parent=5 // pred_region
      %s205 = ssub.s32 %s13, 1
      // Predicated region
      $region13: #{depthwise_separable_conv.1} parent=11 // pred_check
        %p206 = pneg %p60
      $region14: #{depthwise_separable_conv.1} parent=11 // pred_check_branch
        %208 = sbr.rel (%p206) target = $region16
      $region15: #{depthwise_separable_conv.1} parent=11 // pred_region
        _
      $region16: #{depthwise_separable_conv.1} parent=11 // pred_fallthru
        _
      // Predicated region
      $region17: #{depthwise_separable_conv.1} parent=11 // pred_check
        %p209 = pneg %p81
      $region18: #{depthwise_separable_conv.1} parent=11 // pred_check_branch
        %211 = sbr.rel (%p209) target = $region20
      $region19: #{depthwise_separable_conv.1} parent=11 // pred_region
        _
      $region20: #{depthwise_separable_conv.1} parent=11 // pred_fallthru
        _
      // Predicated region
      $region21: #{depthwise_separable_conv.1} parent=11 // pred_check
        %p212 = pneg %p102
      $region22: #{depthwise_separable_conv.1} parent=11 // pred_check_branch
        %214 = sbr.rel (%p212) target = $region24
      $region23: #{depthwise_separable_conv.1} parent=11 // pred_region
        _
      $region24: #{depthwise_separable_conv.1} parent=11 // pred_fallthru
        _
      // Predicated region
      $region25: #{depthwise_separable_conv.1} parent=11 // pred_check
        %p215 = pneg %p123
      $region26: #{depthwise_separable_conv.1} parent=11 // pred_check_branch
        %217 = sbr.rel (%p215) target = $region28
      $region27: #{depthwise_separable_conv.1} parent=11 // pred_region
        _
      $region28: #{depthwise_separable_conv.1} parent=11 // pred_fallthru
        _
      // Predicated region
      $region29: #{depthwise_separable_conv.1} parent=11 // pred_check
        %p218 = pneg %p144
      $region30: #{depthwise_separable_conv.1} parent=11 // pred_check_branch
        %220 = sbr.rel (%p218) target = $region32
      $region31: #{depthwise_separable_conv.1} parent=11 // pred_region
        _
      $region32: #{depthwise_separable_conv.1} parent=11 // pred_fallthru
        _
      // Predicated region
      $region33: #{depthwise_separable_conv.1} parent=11 // pred_check
        %p221 = pneg %p165
      $region34: #{depthwise_separable_conv.1} parent=11 // pred_check_branch
        %223 = sbr.rel (%p221) target = $region36
      $region35: #{depthwise_separable_conv.1} parent=11 // pred_region
        _
      $region36: #{depthwise_separable_conv.1} parent=11 // pred_fallthru
        _
    $region12: #{depthwise_separable_conv.1} parent=5 // pred_fallthru
      _
    %p224 = scmp.lt.s32.totalorder %s13, 2
    // Predicated region
    $region37: #{depthwise_separable_conv.1} parent=5 // pred_check
      %p225 = pneg %p224
    $region38: #{depthwise_separable_conv.1} parent=5 // pred_check_branch
      %227 = sbr.rel (%p225) target = $region40
    $region39: #{depthwise_separable_conv.1} parent=5 // pred_region
      // Predicated region
      $region41: #{depthwise_separable_conv.1} parent=39 // pred_check
        %p228 = pneg %p33
      $region42: #{depthwise_separable_conv.1} parent=39 // pred_check_branch
        %230 = sbr.rel (%p228) target = $region44
      $region43: #{depthwise_separable_conv.1} parent=39 // pred_region
        %p231 = scmp.lt.s32.totalorder %s13, 1
        %s232 = scalar_select %p231, %s13, 1
        %s233 = smul.addr %s232, 2
        %s234 = smul.addr %s233, 4
        %s235 = scalar_lea.vmem %s0, %s234
      $region44: #{depthwise_separable_conv.1} parent=39 // pred_fallthru
        _
    $region40: #{depthwise_separable_conv.1} parent=5 // pred_fallthru
      _
    %p236 = scmp.le.s32.totalorder 1, %s13
    %p237 = scmp.lt.s32.totalorder %s13, 3
    %p238 = pnand %p236, %p237
    %p239 = pneg %p238
    // Predicated region
    $region45: #{depthwise_separable_conv.1} parent=5 // pred_check
      _
    $region46: #{depthwise_separable_conv.1} parent=5 // pred_check_branch
      %241 = sbr.rel (%p238) target = $region48
    $region47: #{depthwise_separable_conv.1} parent=5 // pred_region
      %s242 = ssub.s32 %s13, 1
      %p243 = scmp.lt.s32.totalorder %s18, 1
      %s244 = scalar_select %p243, %s18, 1
      %s245 = smul.addr %s244, 2
      %s246 = smul.addr %s245, 4
      %s247 = scalar_lea.vmem %s0, %s246
      %p248 = pneg %p39
      %p249 = pneg %p36
      %p250 = pneg %p60
      %p251 = pneg %p57
      %p252 = pneg %p81
      %p253 = pneg %p78
      %p254 = pneg %p102
      %p255 = pneg %p99
      %p256 = pneg %p123
      %p257 = pneg %p120
      %p258 = pneg %p144
      %p259 = pneg %p141
      %p260 = pneg %p165
      %p261 = pneg %p162
      %p262 = pneg %p191
      %p263 = pneg %p188
      %p264 = scmp.lt.s32.totalorder %s18, 1
      %s265 = scalar_select %p264, %s18, 1
      %s266 = smul.addr %s265, 2
      %s267 = smul.addr %s266, 8
      %s268 = scalar_lea.vmem %s7, %s267
      %p269 = scmp.lt.s32.totalorder %s18, 1
      %s270 = scalar_select %p269, %s18, 1
      %s271 = smul.addr %s270, 2
      %s272 = smul.addr %s271, 4
      %s273 = scalar_lea.vmem %s0, %s272
      %p274 = scmp.lt.s32.totalorder %s18, 1
      %s275 = scalar_select %p274, %s18, 1
      %s276 = smul.addr %s275, 2
      %s277 = smul.addr %s276, 8
      %s278 = scalar_lea.vmem %s7, %s277
      %v279 = vld [vmem:[%s273] sm:$0xff]
      %v280 = vld [vmem:[%s2] sm:$0xf]
      %v281 = vld [vmem:[%s1] sm:$0xff]
      %v282 = vld [vmem:[%s1 + $0x8] sm:$0xff]
      %v283 = vld [vmem:[%s1 + $0x10] sm:$0x1]
      %v284 = vld [vmem:[%s1 + $0x18] sm:$0x1]
      %v285 = vld [vmem:[%s3] sm:$0xf]
      %287 = vset.pattern.permute.xlu0 0
      %288 = vperm.xlu0 %287, %v285
      %v289 = vpop.permute.xlu0 %288
      %292 = vst [vmem:[#allocation1] ss:$2 sm:$0xff] %v279
      %v293 = vld.sshfl [vmem:[#allocation1] sm:$0xff pattern:$0x75316420]
      %v294 = vld.sshfl [vmem:[#allocation1 + $0x8] sm:$0xff pattern:$0x75316420]
      %297 = vrot.lane.b32.xlu0 %v293, 17
      %v298 = vpop.permute.xlu0 %297
      %299 = vrot.lane.b32.xlu0 %v294, 17
      %v300 = vpop.permute.xlu0 %299
      %v301 = vlaneseq
      %v302 = vand.u32 %v301, 127
      %vm303 = vcmp.lt.s32.totalorder %v302, 17
      %v304 = vsel %vm303, %v298, %v300
      %v305 = vsel %vm303, %v300, %v298
      %v306 = vperm.slane %v281, 0
      %v307 = vperm.slane %v282, 0
      %v308 = vmul.f32 %v305, %v306
      %v309 = vmul.f32 %v304, %v307
      %311 = vset.pattern.permute.xlu0 0
      %312 = vperm.xlu0 %311, %v280
      %v313 = vpop.permute.xlu0 %312
      %v315 = vmul.f32 %v308, %v313
      %v316 = vmul.f32 %v309, %v313
      %v317 = vadd.f32 %v289, %v315
      %v318 = vadd.f32 %v289, %v316
      %319 = vst [vmem:[#allocation1] ss:$2 sm:$0xff] %v279
      %v320 = vld.sshfl [vmem:[#allocation1] sm:$0xff pattern:$0x75316420]
      %v321 = vld.sshfl [vmem:[#allocation1 + $0x8] sm:$0xff pattern:$0x75316420]
      %324 = vrot.lane.b32.xlu0 %v320, 16
      %v325 = vpop.permute.xlu0 %324
      %326 = vrot.lane.b32.xlu0 %v321, 16
      %v327 = vpop.permute.xlu0 %326
      %vm328 = vcmp.lt.s32.totalorder %v302, 16
      %v329 = vsel %vm328, %v325, %v327
      %v330 = vsel %vm328, %v327, %v325
      %v331 = vperm.slane %v281, 1
      %v332 = vperm.slane %v282, 1
      %v333 = vmul.f32 %v330, %v331
      %v334 = vmul.f32 %v329, %v332
      %335 = vset.pattern.permute.xlu0 1
      %336 = vperm.xlu0 %335, %v280
      %v337 = vpop.permute.xlu0 %336
      %v339 = vmul.f32 %v333, %v337
      %v340 = vmul.f32 %v334, %v337
      %v341 = vadd.f32 %v317, %v339
      %v342 = vadd.f32 %v318, %v340
      %343 = vst [vmem:[#allocation1] ss:$2 sm:$0xff] %v279
      %v344 = vld.sshfl [vmem:[#allocation1] sm:$0xff pattern:$0x75316420]
      %v345 = vld.sshfl [vmem:[#allocation1 + $0x8] sm:$0xff pattern:$0x75316420]
      %348 = vrot.lane.b32.xlu0 %v344, 15
      %v349 = vpop.permute.xlu0 %348
      %350 = vrot.lane.b32.xlu0 %v345, 15
      %v351 = vpop.permute.xlu0 %350
      %vm352 = vcmp.lt.s32.totalorder %v302, 15
      %v353 = vsel %vm352, %v349, %v351
      %v354 = vsel %vm352, %v351, %v349
      %v355 = vperm.slane %v281, 2
      %v356 = vperm.slane %v282, 2
      %v357 = vmul.f32 %v354, %v355
      %v358 = vmul.f32 %v353, %v356
      %359 = vset.pattern.permute.xlu0 2
      %360 = vperm.xlu0 %359, %v280
      %v361 = vpop.permute.xlu0 %360
      %v363 = vmul.f32 %v357, %v361
      %v364 = vmul.f32 %v358, %v361
      %v365 = vadd.f32 %v341, %v363
      %v366 = vadd.f32 %v342, %v364
      %367 = vst [vmem:[#allocation1] ss:$2 sm:$0xff] %v279
      %v368 = vld.sshfl [vmem:[#allocation1] sm:$0xff pattern:$0x75316420]
      %v369 = vld.sshfl [vmem:[#allocation1 + $0x8] sm:$0xff pattern:$0x75316420]
      %372 = vrot.lane.b32.xlu0 %v368, 1
      %v373 = vpop.permute.xlu0 %372
      %374 = vrot.lane.b32.xlu0 %v369, 1
      %v375 = vpop.permute.xlu0 %374
      %vm376 = vcmp.lt.s32.totalorder %v302, 1
      %v377 = vsel %vm376, %v373, %v375
      %v378 = vsel %vm376, %v375, %v373
      %v379 = vperm.slane %v281, 3
      %v380 = vperm.slane %v282, 3
      %v381 = vmul.f32 %v378, %v379
      %v382 = vmul.f32 %v377, %v380
      %383 = vset.pattern.permute.xlu0 3
      %384 = vperm.xlu0 %383, %v280
      %v385 = vpop.permute.xlu0 %384
      %v387 = vmul.f32 %v381, %v385
      %v388 = vmul.f32 %v382, %v385
      %v389 = vadd.f32 %v365, %v387
      %v390 = vadd.f32 %v366, %v388
      %391 = vset.pattern.permute.xlu0 4
      %392 = vperm.xlu0 %391, %v280
      %v393 = vpop.permute.xlu0 %392
      %v395 = vunpack.c.l.s4 839922192
      %v396 = vunpack.c.0.s8 %v395
      %v397 = vperm.slane %v393, %v396
      %v399 = vmul.f32 %v279, %v397
      %401 = vst [vmem:[#allocation1] ss:$2 sm:$0xff] %v399
      %v402 = vld.sshfl [vmem:[#allocation1] sm:$0xff pattern:$0x75316420]
      %v403 = vld.sshfl [vmem:[#allocation1 + $0x8] sm:$0xff pattern:$0x75316420]
      %v406 = vadd.f32 %v389, %v402
      %v407 = vadd.f32 %v390, %v403
      %408 = vst [vmem:[#allocation1] ss:$2 sm:$0xff] %v279
      %v409 = vld.sshfl [vmem:[#allocation1] sm:$0xff pattern:$0x75316420]
      %v410 = vld.sshfl [vmem:[#allocation1 + $0x8] sm:$0xff pattern:$0x75316420]
      %413 = vrot.lane.b32.xlu0 %v409, 127
      %v414 = vpop.permute.xlu0 %413
      %415 = vrot.lane.b32.xlu0 %v410, 127
      %v416 = vpop.permute.xlu0 %415
      %vm417 = vcmp.lt.s32.totalorder %v302, 127
      %v418 = vsel %vm417, %v414, %v416
      %v419 = vsel %vm417, %v416, %v414
      %v420 = vperm.slane %v281, 5
      %v421 = vperm.slane %v282, 5
      %v422 = vmul.f32 %v418, %v420
      %v423 = vmul.f32 %v419, %v421
      %424 = vset.pattern.permute.xlu0 5
      %425 = vperm.xlu0 %424, %v280
      %v426 = vpop.permute.xlu0 %425
      %v428 = vmul.f32 %v422, %v426
      %v429 = vmul.f32 %v423, %v426
      %v430 = vadd.f32 %v406, %v428
      %v431 = vadd.f32 %v407, %v429
      %432 = vst [vmem:[#allocation1] ss:$2 sm:$0xff] %v279
      %v433 = vld.sshfl [vmem:[#allocation1] sm:$0xff pattern:$0x75316420]
      %v434 = vld.sshfl [vmem:[#allocation1 + $0x8] sm:$0xff pattern:$0x75316420]
      %437 = vrot.lane.b32.xlu0 %v433, 113
      %v438 = vpop.permute.xlu0 %437
      %439 = vrot.lane.b32.xlu0 %v434, 113
      %v440 = vpop.permute.xlu0 %439
      %vm441 = vcmp.lt.s32.totalorder %v302, 113
      %v442 = vsel %vm441, %v438, %v440
      %v443 = vsel %vm441, %v440, %v438
      %v444 = vperm.slane %v281, 6
      %v445 = vperm.slane %v282, 6
      %v446 = vmul.f32 %v442, %v444
      %v447 = vmul.f32 %v443, %v445
      %448 = vset.pattern.permute.xlu0 6
      %449 = vperm.xlu0 %448, %v280
      %v450 = vpop.permute.xlu0 %449
      %v452 = vmul.f32 %v446, %v450
      %v453 = vmul.f32 %v447, %v450
      %v454 = vadd.f32 %v430, %v452
      %v455 = vadd.f32 %v431, %v453
      %456 = vst [vmem:[#allocation1] ss:$2 sm:$0xff] %v279
      %v457 = vld.sshfl [vmem:[#allocation1] sm:$0xff pattern:$0x75316420]
      %v458 = vld.sshfl [vmem:[#allocation1 + $0x8] sm:$0xff pattern:$0x75316420]
      %461 = vrot.lane.b32.xlu0 %v457, 112
      %v462 = vpop.permute.xlu0 %461
      %463 = vrot.lane.b32.xlu0 %v458, 112
      %v464 = vpop.permute.xlu0 %463
      %vm465 = vcmp.lt.s32.totalorder %v302, 112
      %v466 = vsel %vm465, %v462, %v464
      %v467 = vsel %vm465, %v464, %v462
      %v468 = vperm.slane %v281, 7
      %v469 = vperm.slane %v282, 7
      %v470 = vmul.f32 %v466, %v468
      %v471 = vmul.f32 %v467, %v469
      %472 = vset.pattern.permute.xlu0 7
      %473 = vperm.xlu0 %472, %v280
      %v474 = vpop.permute.xlu0 %473
      %v476 = vmul.f32 %v470, %v474
      %v477 = vmul.f32 %v471, %v474
      %v478 = vadd.f32 %v454, %v476
      %v479 = vadd.f32 %v455, %v477
      %480 = vst [vmem:[#allocation1] ss:$2 sm:$0xff] %v279
      %v481 = vld.sshfl [vmem:[#allocation1] sm:$0xff pattern:$0x75316420]
      %v482 = vld.sshfl [vmem:[#allocation1 + $0x8] sm:$0xff pattern:$0x75316420]
      %485 = vrot.lane.b32.xlu0 %v481, 111
      %v486 = vpop.permute.xlu0 %485
      %487 = vrot.lane.b32.xlu0 %v482, 111
      %v488 = vpop.permute.xlu0 %487
      %vm489 = vcmp.lt.s32.totalorder %v302, 111
      %v490 = vsel %vm489, %v486, %v488
      %v491 = vsel %vm489, %v488, %v486
      %v492 = vperm.slane %v283, 0
      %v493 = vperm.slane %v284, 0
      %v494 = vmul.f32 %v490, %v492
      %v495 = vmul.f32 %v491, %v493
      %496 = vset.pattern.permute.xlu0 8
      %497 = vperm.xlu0 %496, %v280
      %v498 = vpop.permute.xlu0 %497
      %v500 = vmul.f32 %v494, %v498
      %v501 = vmul.f32 %v495, %v498
      %v502 = vadd.f32 %v478, %v500
      %v503 = vadd.f32 %v479, %v501
      %v504 = vld [vmem:[%s4] sm:$0xff]
      %506 = vset.pattern.permute.xlu0 0
      %507 = vperm.xlu0 %506, %v504
      %v508 = vpop.permute.xlu0 %507
      %v510 = vperm.slane %v502, 0
      %v511 = vperm.slane %v503, 0
      %v512 = vmul.f32 %v508, %v510
      %v513 = vmul.f32 %v508, %v511
      %514 = vset.pattern.permute.xlu0 1
      %515 = vperm.xlu0 %514, %v504
      %v516 = vpop.permute.xlu0 %515
      %v518 = vperm.slane %v502, 1
      %v519 = vperm.slane %v503, 1
      %v520 = vmul.f32 %v516, %v518
      %v521 = vmul.f32 %v516, %v519
      %v522 = vadd.f32 %v512, %v520
      %v523 = vadd.f32 %v513, %v521
      %524 = vset.pattern.permute.xlu0 2
      %525 = vperm.xlu0 %524, %v504
      %v526 = vpop.permute.xlu0 %525
      %v528 = vperm.slane %v502, 2
      %v529 = vperm.slane %v503, 2
      %v530 = vmul.f32 %v526, %v528
      %v531 = vmul.f32 %v526, %v529
      %v532 = vadd.f32 %v522, %v530
      %v533 = vadd.f32 %v523, %v531
      %534 = vset.pattern.permute.xlu0 3
      %535 = vperm.xlu0 %534, %v504
      %v536 = vpop.permute.xlu0 %535
      %v538 = vperm.slane %v502, 3
      %v539 = vperm.slane %v503, 3
      %v540 = vmul.f32 %v536, %v538
      %v541 = vmul.f32 %v536, %v539
      %v542 = vadd.f32 %v532, %v540
      %v543 = vadd.f32 %v533, %v541
      %v544 = vld [vmem:[%s5] sm:$0xff]
      %546 = vset.pattern.permute.xlu0 0
      %547 = vperm.xlu0 %546, %v544
      %v548 = vpop.permute.xlu0 %547
      %v550 = vmul.f32 %v542, %v548
      %v551 = vmul.f32 %v543, %v548
      %v552 = vld [vmem:[%s6] sm:$0xff]
      %554 = vset.pattern.permute.xlu0 0
      %555 = vperm.xlu0 %554, %v552
      %v556 = vpop.permute.xlu0 %555
      %v558 = vadd.f32 %v550, %v556
      %v559 = vadd.f32 %v551, %v556
      %v560 = vmax.f32 %v558, 0.0
      %v561 = vmax.f32 %v559, 0.0
      %562 = vst [vmem:[%s278] sm:$0xff] %v560
      %563 = vst [vmem:[%s278 + $0x8] sm:$0xff] %v561
      %p564 = scmp.lt.s32.totalorder %s18, 1
      %s565 = scalar_select %p564, %s18, 1
      %s566 = smul.addr %s565, 2
      %s567 = smul.addr %s566, 8
      %s568 = scalar_lea.vmem %s7, %s567
      // Predicated region
      $region49: #{depthwise_separable_conv.1} parent=47 // pred_check
        %p569 = pneg %p188
      $region50: #{depthwise_separable_conv.1} parent=47 // pred_check_branch
        %571 = sbr.rel (%p569) target = $region52
      $region51: #{depthwise_separable_conv.1} parent=47 // pred_region
        _
      $region52: #{depthwise_separable_conv.1} parent=47 // pred_fallthru
        _
    $region48: #{depthwise_separable_conv.1} parent=5 // pred_fallthru
      _
    %p572 = scmp.le.s32.totalorder 2, %s13
    // Predicated region
    $region53: #{depthwise_separable_conv.1} parent=5 // pred_check
      %p573 = pneg %p572
    $region54: #{depthwise_separable_conv.1} parent=5 // pred_check_branch
      %575 = sbr.rel (%p573) target = $region56
    $region55: #{depthwise_separable_conv.1} parent=5 // pred_region
      %s576 = ssub.s32 %s13, 2
      // Predicated region
      $region57: #{depthwise_separable_conv.1} parent=55 // pred_check
        %p577 = pneg %p194
      $region58: #{depthwise_separable_conv.1} parent=55 // pred_check_branch
        %579 = sbr.rel (%p577) target = $region60
      $region59: #{depthwise_separable_conv.1} parent=55 // pred_region
        %p580 = scmp.lt.s32.totalorder %s19, 1
        %s581 = scalar_select %p580, %s19, 1
        %s582 = smul.addr %s581, 2
        %s583 = smul.addr %s582, 8
        %s584 = scalar_lea.vmem %s7, %s583
      $region60: #{depthwise_separable_conv.1} parent=55 // pred_fallthru
        _
    $region56: #{depthwise_separable_conv.1} parent=5 // pred_fallthru
      _
  $region6: #{depthwise_separable_conv.1} parent=0 // loop_footer
    %s17 = sadd.s32 1, %s13
  $region7: #{depthwise_separable_conv.1} parent=0 // loop_footer_branch
    %12 = sbr.rel target = $region3
  $region8: #{depthwise_separable_conv.1} parent=0 // loop_exit
    _

</llo_original>
